<compile_context>
chip_gen: v7x
topology: tpu7x:2x2x1
jax: 0.10.0
libtpu: 0.0.40
codegen_flags: <defaults>
</compile_context>

<pallas_src>
import jax
import jax.numpy as jnp
from jax.experimental import pallas as pl
from jax.experimental.pallas import tpu as pltpu

BN_EPS = 1e-5
LANE = 128


# ---------------------------------------------------------------------------
# Fused Pallas kernel
# ---------------------------------------------------------------------------
def _fused_mlp_kernel(*refs):
    """refs = (x, w0, b0, w1, b1, ..., wL, bL, out).

    Hidden layers: h = relu(h @ w + b)   (BN already folded into next w/b)
    Final layer:   out = h @ w + b       (w/b zero-padded to 128 output lanes)

    Matmuls run in the weights' dtype (bf16 on the perf path) on the MXU with
    an f32 accumulator; bias-add / ReLU stay in f32.
    """
    x_ref, o_ref = refs[0], refs[-1]
    param_refs = refs[1:-1]
    n_layers = len(param_refs) // 2

    h = x_ref[...]
    for i in range(n_layers):
        w = param_refs[2 * i][...]
        b = param_refs[2 * i + 1][...]                 # f32 (1, d)
        h = jnp.dot(h.astype(w.dtype), w,
                    preferred_element_type=jnp.float32) + b
        if i < n_layers - 1:                           # every layer but last
            h = jnp.maximum(h, 0.0)                    # ReLU (f32)
        # Dropout(p=0.1): identity in eval mode.
    o_ref[...] = h.astype(o_ref.dtype)                 # lane-dense store


# ---------------------------------------------------------------------------
# Batch-tile selection
# ---------------------------------------------------------------------------
def _default_block_batch(B):
    # Prefer MXU-M-aligned tiles (multiples of 256) that give >= 2 grid steps
    # (DMA/compute overlap + both v7x TensorCores busy).
    for tb in (2048, 1024, 512, 256):
        if B % tb == 0 and B // tb >= 2:
            return tb
    # Otherwise any 8-aligned divisor of B giving >= 2 steps, as large as possible.
    if B % 8 == 0:
        tb = min(B // 2, 2048)
        tb -= tb % 8
        while tb >= 8:
            if B % tb == 0:
                return tb
            tb -= 8
    return B  # tiny / odd batch: one full-array block (always a legal BlockSpec)


# ---------------------------------------------------------------------------
# Forward pass (single fused pallas_call)
# ---------------------------------------------------------------------------
def game_state_mlp_forward(x, folded_params, *, out_dim, block_batch=None,
                           compute_dtype=jnp.bfloat16):
    B, in_dim = x.shape
    out_pad = folded_params[-1]["w_t"].shape[1]        # lane-padded (>=128)

    TB = _default_block_batch(B) if block_batch is None else block_batch
    assert B % TB == 0, "block_batch must divide batch"
    assert TB == B or TB % 8 == 0, \
        "block_batch must be a multiple of 8 (prefer 128/256) or equal the batch"
    grid = (B // TB,)

    x_c = x.astype(compute_dtype)
    in_specs = [pl.BlockSpec((TB, in_dim), lambda i: (i, 0))]
    args = [x_c]

    flops = 0
    param_bytes = 0
    for layer in folded_params:
        w_t = layer["w_t"].astype(compute_dtype)
        b = layer["b"]                                  # stays f32 (tiny)
        in_specs.append(pl.BlockSpec(w_t.shape, lambda i: (0, 0)))  # pinned
        in_specs.append(pl.BlockSpec(b.shape, lambda i: (0, 0)))    # pinned
        args.extend([w_t, b])
        flops += 2 * B * w_t.shape[0] * w_t.shape[1]
        param_bytes += (w_t.size * w_t.dtype.itemsize
                        + b.size * b.dtype.itemsize)

    act_itemsize = x_c.dtype.itemsize
    bytes_accessed = (B * in_dim * act_itemsize        # streamed input
                      + B * out_pad * 4                # streamed output (f32)
                      + param_bytes)                   # pinned params

    # VMEM budget: double-buffered x/out tiles + pinned params (+ slack).
    vmem_need = (2 * (TB * in_dim * act_itemsize + TB * out_pad * 4)
                 + param_bytes + (1 << 20))
    vmem_limit = None
    if vmem_need > (14 << 20):         # above the v5e 16 MiB scoped default
        vmem_limit = min(int(vmem_need * 3 // 2), 32 << 20)

    out_padded = pl.pallas_call(
        _fused_mlp_kernel,
        out_shape=jax.ShapeDtypeStruct((B, out_pad), jnp.float32),
        grid=grid,
        in_specs=in_specs,
        out_specs=pl.BlockSpec((TB, out_pad), lambda i: (i, 0)),
        compiler_params=pltpu.CompilerParams(
            dimension_semantics=("parallel",),
            vmem_limit_bytes=vmem_limit),
        cost_estimate=pl.CostEstimate(
            flops=flops, transcendentals=0, bytes_accessed=bytes_accessed),
    )(*args)
    return out_padded[:, :out_dim]


# ---------------------------------------------------------------------------
# Parameter construction (deterministic, mirrors nn.Module __init__ shapes)
# ---------------------------------------------------------------------------
def init_params(key, input_dim, hidden_dims, output_dim):
    params = []
    prev = input_dim
    dims = list(hidden_dims) + [output_dim]
    for i, d in enumerate(dims):
        key, kw, kb, kg, kbt, km, kv = jax.random.split(key, 7)
        # nn.Linear weight is (out, in); store transposed (in, out) for MXU.
        bound = 1.0 / (prev ** 0.5)
        w_t = jax.random.uniform(kw, (prev, d), jnp.float32, -bound, bound)
        b = jax.random.uniform(kb, (1, d), jnp.float32, -bound, bound)
        if i < len(hidden_dims):
            gamma = 1.0 + 0.1 * jax.random.normal(kg, (1, d), jnp.float32)
            beta = 0.1 * jax.random.normal(kbt, (1, d), jnp.float32)
            mean = 0.1 * jax.random.normal(km, (1, d), jnp.float32)
            var = jnp.abs(jax.random.normal(kv, (1, d), jnp.float32)) + 0.5
            params.append(dict(w_t=w_t, b=b, gamma=gamma, beta=beta,
                               mean=mean, var=var))
        else:
            params.append(dict(w_t=w_t, b=b))
        prev = d
    return params


def fold_bn_into_weights(params, lane=LANE):
    """Fold each hidden layer's eval-mode BatchNorm into the FOLLOWING
    Linear's weights/bias; zero-pad the final layer's output lanes to a
    multiple of 128 so the kernel's output store/DMA is lane-dense."""
    folded = []
    pending_scale = pending_shift = None
    n = len(params)
    for idx, layer in enumerate(params):
        w_orig, b = layer["w_t"], layer["b"]
        w_t = w_orig
        if pending_scale is not None:
            # (h*s + t) @ W + b == h @ (s.T * W) + (t @ W + b)
            w_t = pending_scale.T * w_orig            # (prev,1) * (prev,out)
            b = b + pending_shift @ w_orig            # (1,prev) @ (prev,out)
        if idx == n - 1:
            d = w_t.shape[1]
            d_pad = LANE * pl.cdiv(d, lane)
            if d_pad != d:
                w_t = jnp.pad(w_t, ((0, 0), (0, d_pad - d)))
                b = jnp.pad(b, ((0, 0), (0, d_pad - d)))
        folded.append(dict(w_t=w_t, b=b))
        if "gamma" in layer:
            scale = layer["gamma"] * jax.lax.rsqrt(layer["var"] + BN_EPS)
            shift = layer["beta"] - layer["mean"] * scale
            pending_scale, pending_shift = scale, shift
        else:
            pending_scale = pending_shift = None
    return folded


# ---------------------------------------------------------------------------
# Pure-JAX reference (un-folded, explicit BN math) for correctness check
# ---------------------------------------------------------------------------
def reference_forward(x, params):
    h = x
    for layer in params[:-1]:
        y = h @ layer["w_t"] + layer["b"]
        y = jnp.maximum(y, 0.0)
        y = (y - layer["mean"]) * jax.lax.rsqrt(layer["var"] + BN_EPS)
        y = y * layer["gamma"] + layer["beta"]
        h = y                                      # Dropout: identity (eval)
    return h @ params[-1]["w_t"] + params[-1]["b"]


# ---------------------------------------------------------------------------
if __name__ == "__main__":
    input_dim, hidden_dims, output_dim = 16, [32, 32], 8

    key = jax.random.PRNGKey(0)
    key, kx1, kx2 = jax.random.split(key, 3)
    params = init_params(key, input_dim, hidden_dims, output_dim)
    folded = fold_bn_into_weights(params)

    fwd = jax.jit(game_state_mlp_forward,
                  static_argnames=("out_dim", "block_batch", "compute_dtype"))

    # 1) Exact-math check: tiny batch, f32 compute, single full-array block.
    x_small = jax.random.normal(kx1, (4, input_dim), jnp.float32)
    out_small = jax.block_until_ready(
        fwd(x_small, folded, out_dim=output_dim, compute_dtype=jnp.float32))
    ref_small = reference_forward(x_small, params)
    assert out_small.shape == (4, output_dim)
    assert jnp.allclose(out_small, ref_small, atol=1e-4, rtol=1e-4), \
        "f32 mismatch vs reference"

    # 2) Perf-path check: batch 512 -> TB=256, 2 "parallel" grid steps,
    #    bf16 MXU matmuls, lane-dense padded output.
    x_big = jax.random.normal(kx2, (512, input_dim), jnp.float32)
    out_big = jax.block_until_ready(fwd(x_big, folded, out_dim=output_dim))
    ref_big = reference_forward(x_big, params)
    assert out_big.shape == (512, output_dim)
    assert jnp.allclose(out_big, ref_big, atol=3e-2, rtol=3e-2), \
        "bf16 mismatch vs reference"

    print("KERNEL_OK")
</pallas_src>

<mosaic_0001>
module attributes {stable_mosaic.version = 11 : i64} {
  func.func @_fused_mlp_kernel(%arg0: i32, %arg1: memref<4x16xf32, #tpu.memory_space<vmem>>, %arg2: memref<16x32xf32, #tpu.memory_space<vmem>>, %arg3: memref<1x32xf32, #tpu.memory_space<vmem>>, %arg4: memref<32x32xf32, #tpu.memory_space<vmem>>, %arg5: memref<1x32xf32, #tpu.memory_space<vmem>>, %arg6: memref<32x128xf32, #tpu.memory_space<vmem>>, %arg7: memref<1x128xf32, #tpu.memory_space<vmem>>, %arg8: memref<4x128xf32, #tpu.memory_space<vmem>>) attributes {dimension_semantics = [#tpu.dimension_semantics<parallel>], iteration_bounds = array<i64: 1>, scalar_prefetch = 0 : i64, scratch_operands = 0 : i64, tpu.core_type = #tpu.core_type<tc>, window_params = [{transform_indices = @transform_0, window_bounds = array<i64: 4, 16>}, {pipeline_mode = #tpu.pipeline_mode<synchronous>, transform_indices = @transform_1, window_bounds = array<i64: 16, 32>}, {pipeline_mode = #tpu.pipeline_mode<synchronous>, transform_indices = @transform_2, window_bounds = array<i64: 1, 32>}, {pipeline_mode = #tpu.pipeline_mode<synchronous>, transform_indices = @transform_3, window_bounds = array<i64: 32, 32>}, {pipeline_mode = #tpu.pipeline_mode<synchronous>, transform_indices = @transform_4, window_bounds = array<i64: 1, 32>}, {pipeline_mode = #tpu.pipeline_mode<synchronous>, transform_indices = @transform_5, window_bounds = array<i64: 32, 128>}, {pipeline_mode = #tpu.pipeline_mode<synchronous>, transform_indices = @transform_6, window_bounds = array<i64: 1, 128>}, {transform_indices = @transform_7, window_bounds = array<i64: 4, 128>}]} {
    %c0 = arith.constant 0 : index
    %c0_0 = arith.constant 0 : index
    %0 = vector.load %arg1[%c0, %c0_0] : memref<4x16xf32, #tpu.memory_space<vmem>>, vector<4x16xf32>
    %c0_1 = arith.constant 0 : index
    %c0_2 = arith.constant 0 : index
    %1 = vector.load %arg2[%c0_1, %c0_2] : memref<16x32xf32, #tpu.memory_space<vmem>>, vector<16x32xf32>
    %c0_3 = arith.constant 0 : index
    %c0_4 = arith.constant 0 : index
    %2 = vector.load %arg3[%c0_3, %c0_4] : memref<1x32xf32, #tpu.memory_space<vmem>>, vector<1x32xf32>
    %cst = arith.constant dense<0.000000e+00> : vector<4x32xf32>
    %3 = tpu.matmul %0, %1, %cst {dimension_numbers = #tpu.dot_dimension_numbers<[1], [0], [0], [1], [0, 0, 1, 1], [], []>} : vector<4x16xf32>, vector<16x32xf32>, vector<4x32xf32> -> vector<4x32xf32>
    %4 = vector.broadcast %2 : vector<1x32xf32> to vector<4x32xf32>
    %5 = arith.addf %3, %4 : vector<4x32xf32>
    %cst_5 = arith.constant 0.000000e+00 : f32
    %6 = vector.broadcast %cst_5 : f32 to vector<4x32xf32>
    %7 = arith.maximumf %5, %6 : vector<4x32xf32>
    %c0_6 = arith.constant 0 : index
    %c0_7 = arith.constant 0 : index
    %8 = vector.load %arg4[%c0_6, %c0_7] : memref<32x32xf32, #tpu.memory_space<vmem>>, vector<32x32xf32>
    %c0_8 = arith.constant 0 : index
    %c0_9 = arith.constant 0 : index
    %9 = vector.load %arg5[%c0_8, %c0_9] : memref<1x32xf32, #tpu.memory_space<vmem>>, vector<1x32xf32>
    %cst_10 = arith.constant dense<0.000000e+00> : vector<4x32xf32>
    %10 = tpu.matmul %7, %8, %cst_10 {dimension_numbers = #tpu.dot_dimension_numbers<[1], [0], [0], [1], [0, 0, 1, 1], [], []>} : vector<4x32xf32>, vector<32x32xf32>, vector<4x32xf32> -> vector<4x32xf32>
    %11 = vector.broadcast %9 : vector<1x32xf32> to vector<4x32xf32>
    %12 = arith.addf %10, %11 : vector<4x32xf32>
    %cst_11 = arith.constant 0.000000e+00 : f32
    %13 = vector.broadcast %cst_11 : f32 to vector<4x32xf32>
    %14 = arith.maximumf %12, %13 : vector<4x32xf32>
    %c0_12 = arith.constant 0 : index
    %c0_13 = arith.constant 0 : index
    %15 = vector.load %arg6[%c0_12, %c0_13] : memref<32x128xf32, #tpu.memory_space<vmem>>, vector<32x128xf32>
    %c0_14 = arith.constant 0 : index
    %c0_15 = arith.constant 0 : index
    %16 = vector.load %arg7[%c0_14, %c0_15] : memref<1x128xf32, #tpu.memory_space<vmem>>, vector<1x128xf32>
    %cst_16 = arith.constant dense<0.000000e+00> : vector<4x128xf32>
    %17 = tpu.matmul %14, %15, %cst_16 {dimension_numbers = #tpu.dot_dimension_numbers<[1], [0], [0], [1], [0, 0, 1, 1], [], []>} : vector<4x32xf32>, vector<32x128xf32>, vector<4x128xf32> -> vector<4x128xf32>
    %18 = vector.broadcast %16 : vector<1x128xf32> to vector<4x128xf32>
    %19 = arith.addf %17, %18 : vector<4x128xf32>
    %c0_17 = arith.constant 0 : index
    %c0_18 = arith.constant 0 : index
    %20 = vector.load %arg8[%c0_17, %c0_18] : memref<4x128xf32, #tpu.memory_space<vmem>>, vector<4x128xf32>
    tpu.vector_store %arg8[%c0_17, %c0_18], %19 {strides = array<i32>} : memref<4x128xf32, #tpu.memory_space<vmem>>, vector<4x128xf32>,
    return
  }
  func.func @transform_0(%arg0: i32) -> (i32, i32) {
    %c0_i32 = arith.constant 0 : i32
    %c0_i32_0 = arith.constant 0 : i32
    return %arg0, %c0_i32 : i32, i32
  }
  func.func @transform_1(%arg0: i32) -> (i32, i32) {
    %c0_i32 = arith.constant 0 : i32
    %c0_i32_0 = arith.constant 0 : i32
    %c0_i32_1 = arith.constant 0 : i32
    return %c0_i32, %c0_i32_0 : i32, i32
  }
  func.func @transform_2(%arg0: i32) -> (i32, i32) {
    %c0_i32 = arith.constant 0 : i32
    %c0_i32_0 = arith.constant 0 : i32
    %c0_i32_1 = arith.constant 0 : i32
    return %c0_i32, %c0_i32_0 : i32, i32
  }
  func.func @transform_3(%arg0: i32) -> (i32, i32) {
    %c0_i32 = arith.constant 0 : i32
    %c0_i32_0 = arith.constant 0 : i32
    %c0_i32_1 = arith.constant 0 : i32
    return %c0_i32, %c0_i32_0 : i32, i32
  }
  func.func @transform_4(%arg0: i32) -> (i32, i32) {
    %c0_i32 = arith.constant 0 : i32
    %c0_i32_0 = arith.constant 0 : i32
    %c0_i32_1 = arith.constant 0 : i32
    return %c0_i32, %c0_i32_0 : i32, i32
  }
  func.func @transform_5(%arg0: i32) -> (i32, i32) {
    %c0_i32 = arith.constant 0 : i32
    %c0_i32_0 = arith.constant 0 : i32
    %c0_i32_1 = arith.constant 0 : i32
    return %c0_i32, %c0_i32_0 : i32, i32
  }
  func.func @transform_6(%arg0: i32) -> (i32, i32) {
    %c0_i32 = arith.constant 0 : i32
    %c0_i32_0 = arith.constant 0 : i32
    %c0_i32_1 = arith.constant 0 : i32
    return %c0_i32, %c0_i32_0 : i32, i32
  }
  func.func @transform_7(%arg0: i32) -> (i32, i32) {
    %c0_i32 = arith.constant 0 : i32
    %c0_i32_0 = arith.constant 0 : i32
    return %arg0, %c0_i32 : i32, i32
  }
}

</mosaic_0001>

<llo_original>
// kernel: game_state_mlp_forward.1
$region0: #{game_state_mlp_forward.1}
  #allocation0 [shape = 'u32[]', space=smem, size = 0x4, offset = 0x4, fixed_abs, tag = 'smem constant byte address 0x4 - core index']
  #allocation1 [shape = 'u32[144,128]{1,0:T(1,128)}', space=vmem, size = 0x12000, scoped, tag = 'internal scratch']
  %s0 = inlined_call_operand.hbm [shape: f32[4,16], index: 0, kind: input, shape index: {}]
  %s1 = inlined_call_operand.hbm [shape: f32[16,32], index: 1, kind: input, shape index: {}]
  %s2 = inlined_call_operand.vmem [shape: f32[1,32], index: 2, kind: input, shape index: {}]
  %s3 = inlined_call_operand.hbm [shape: f32[32,32], index: 3, kind: input, shape index: {}]
  %s4 = inlined_call_operand.vmem [shape: f32[1,32], index: 4, kind: input, shape index: {}]
  %s5 = inlined_call_operand.hbm [shape: f32[32,128], index: 5, kind: input, shape index: {}]
  %s6 = inlined_call_operand.vmem [shape: f32[1,128], index: 6, kind: input, shape index: {}]
  %s7 = inlined_call_operand.hbm [shape: f32[4,128], index: 7, kind: output, shape index: {}]
  %s8 = sld [smem:[#allocation0]]
  $region54: #{game_state_mlp_forward.1} parent=0
    _
  %s10 = ssub.s32 1, %s8
  %s11 = scalar_select 0, %s10, %s8
  $region1: #{game_state_mlp_forward.1} parent=0
    #allocation2 [shape = 'u8[2048]{0}', space=vmem, size = 0x800, scoped, tag = 'input window, operand 0, single buffered']
    #allocation3 [shape = 's32[1]{0}', space=sflag, size = 0x4, scoped, tag = 'scoped memory for game_state_mlp_forward.1']
    #allocation4 [shape = 's32[1]{0}', space=sflag, size = 0x4, scoped, tag = 'scoped memory for game_state_mlp_forward.1']
    #allocation5 [shape = 'u8[8192]{0}', space=vmem, size = 0x2000, scoped, tag = 'input window, operand 1, single buffered']
    #allocation6 [shape = 's32[1]{0}', space=sflag, size = 0x4, scoped, tag = 'scoped memory for game_state_mlp_forward.1']
    #allocation7 [shape = 'u8[16384]{0}', space=vmem, size = 0x4000, scoped, tag = 'input window, operand 3, single buffered']
    #allocation8 [shape = 'u8[16384]{0}', space=vmem, size = 0x4000, scoped, tag = 'input window, operand 5, single buffered']
    #allocation9 [shape = 's32[1]{0}', space=sflag, size = 0x4, scoped, tag = 'scoped memory for game_state_mlp_forward.1']
    #allocation10 [shape = 'u8[2048]{0}', space=vmem, size = 0x800, scoped, tag = 'output window, operand 0, single buffered']
    %12 = vsyncpa [#allocation3], 0
    %13 = vsyncpa [#allocation6], 0
    %14 = vsyncpa [#allocation9], 0
    %15 = vsyncpa [#allocation4], 0
    // Predicated region
    $region2: #{game_state_mlp_forward.1} parent=1 // pred_check
      _
    $region3: #{game_state_mlp_forward.1} parent=1 // pred_check_branch
      %17 = sbr.rel (0) target = $region5
    $region4: #{game_state_mlp_forward.1} parent=1 // pred_region
      %s19 = ssub.s32 64, 64
      %20 = vsyncadd [#allocation3], %s19
      %s22 = sshll.u32 [#allocation2], 4
      %s23 = int_to_ptr.vmem [resolvable:$true] %s22
      %25 = dma.hbm_to_vmem [thread:$0]  %s0, 64, %s23, [#allocation3]
    $region5: #{game_state_mlp_forward.1} parent=1 // pred_fallthru
      _
    // Predicated region
    $region6: #{game_state_mlp_forward.1} parent=1 // pred_check
      _
    $region7: #{game_state_mlp_forward.1} parent=1 // pred_check_branch
      %27 = sbr.rel (0) target = $region9
    $region8: #{game_state_mlp_forward.1} parent=1 // pred_region
      %s29 = ssub.s32 256, 256
      %30 = vsyncadd [#allocation6], %s29
      %s31 = sshll.u32 [#allocation5], 4
      %s32 = int_to_ptr.vmem [resolvable:$true] %s31
      %37 = dma.hbm_to_vmem [thread:$0]  %s1, 256, %s32, [#allocation6], 128, 128, 8
    $region9: #{game_state_mlp_forward.1} parent=1 // pred_fallthru
      _
    // Predicated region
    $region10: #{game_state_mlp_forward.1} parent=1 // pred_check
      _
    $region11: #{game_state_mlp_forward.1} parent=1 // pred_check_branch
      %39 = sbr.rel (0) target = $region13
    $region12: #{game_state_mlp_forward.1} parent=1 // pred_region
      _
    $region13: #{game_state_mlp_forward.1} parent=1 // pred_fallthru
      _
    // Predicated region
    $region14: #{game_state_mlp_forward.1} parent=1 // pred_check
      _
    $region15: #{game_state_mlp_forward.1} parent=1 // pred_check_branch
      %41 = sbr.rel (0) target = $region17
    $region16: #{game_state_mlp_forward.1} parent=1 // pred_region
      %s43 = ssub.s32 512, 512
      %44 = vsyncadd [#allocation6], %s43
      %s45 = sshll.u32 [#allocation7], 4
      %s46 = int_to_ptr.vmem [resolvable:$true] %s45
      %51 = dma.hbm_to_vmem [thread:$0]  %s3, 512, %s46, [#allocation6], 128, 128, 8
    $region17: #{game_state_mlp_forward.1} parent=1 // pred_fallthru
      _
    // Predicated region
    $region18: #{game_state_mlp_forward.1} parent=1 // pred_check
      _
    $region19: #{game_state_mlp_forward.1} parent=1 // pred_check_branch
      %53 = sbr.rel (0) target = $region21
    $region20: #{game_state_mlp_forward.1} parent=1 // pred_region
      _
    $region21: #{game_state_mlp_forward.1} parent=1 // pred_fallthru
      _
    // Predicated region
    $region22: #{game_state_mlp_forward.1} parent=1 // pred_check
      _
    $region23: #{game_state_mlp_forward.1} parent=1 // pred_check_branch
      %55 = sbr.rel (0) target = $region25
    $region24: #{game_state_mlp_forward.1} parent=1 // pred_region
      %s57 = ssub.s32 512, 512
      %58 = vsyncadd [#allocation9], %s57
      %s59 = sshll.u32 [#allocation8], 4
      %s60 = int_to_ptr.vmem [resolvable:$true] %s59
      %65 = dma.hbm_to_vmem [thread:$0]  %s5, 512, %s60, [#allocation9], 128, 128, 8
    $region25: #{game_state_mlp_forward.1} parent=1 // pred_fallthru
      _
    // Predicated region
    $region26: #{game_state_mlp_forward.1} parent=1 // pred_check
      _
    $region27: #{game_state_mlp_forward.1} parent=1 // pred_check_branch
      %67 = sbr.rel (0) target = $region29
    $region28: #{game_state_mlp_forward.1} parent=1 // pred_region
      _
    $region29: #{game_state_mlp_forward.1} parent=1 // pred_fallthru
      _
    // Predicated region
    $region30: #{game_state_mlp_forward.1} parent=1 // pred_check
      _
    $region31: #{game_state_mlp_forward.1} parent=1 // pred_check_branch
      %69 = sbr.rel (0) target = $region33
    $region32: #{game_state_mlp_forward.1} parent=1 // pred_region
      %70 = dma.done [#allocation3], 64
    $region33: #{game_state_mlp_forward.1} parent=1 // pred_fallthru
      _
    // Predicated region
    $region34: #{game_state_mlp_forward.1} parent=1 // pred_check
      _
    $region35: #{game_state_mlp_forward.1} parent=1 // pred_check_branch
      %72 = sbr.rel (0) target = $region37
    $region36: #{game_state_mlp_forward.1} parent=1 // pred_region
      %73 = dma.done [#allocation6], 256
    $region37: #{game_state_mlp_forward.1} parent=1 // pred_fallthru
      _
    // Predicated region
    $region38: #{game_state_mlp_forward.1} parent=1 // pred_check
      _
    $region39: #{game_state_mlp_forward.1} parent=1 // pred_check_branch
      %75 = sbr.rel (0) target = $region41
    $region40: #{game_state_mlp_forward.1} parent=1 // pred_region
      %76 = dma.done [#allocation6], 512
    $region41: #{game_state_mlp_forward.1} parent=1 // pred_fallthru
      _
    // Predicated region
    $region42: #{game_state_mlp_forward.1} parent=1 // pred_check
      _
    $region43: #{game_state_mlp_forward.1} parent=1 // pred_check_branch
      %78 = sbr.rel (0) target = $region45
    $region44: #{game_state_mlp_forward.1} parent=1 // pred_region
      %79 = dma.done [#allocation9], 512
    $region45: #{game_state_mlp_forward.1} parent=1 // pred_fallthru
      _
    %v80 = vld [vmem:[#allocation2] sm:$0xf]
    %v81 = vld [vmem:[#allocation5] sm:$0xff]
    %v82 = vld [vmem:[#allocation5 + $0x8] sm:$0xff]
    %v83 = vld [vmem:[%s2] sm:$0x1]
    %v85 = vlaneseq
    %v86 = vshrl.u32 %v85, 7
    %v87 = vsub.s32 0, %v86
    %v88 = vrot.slane %v83, %v87
    %vm90 = vcmask 130048
    %v92 = vsel %vm90, %v80, 0
    %94 = vmatprep.subr.mxu0 0.0
    %95 = vmatpush1.msra.mxu0 %v81
    %96 = vmatprep.subr.mxu0 0.0
    %97 = vmatpush1.msra.mxu0 %v82
    %98 = vmatprep.subr.mxu0 0.0
    %99 = vmatpush1.msra.mxu0 0.0
    %100 = vmatprep.subr.mxu0 0.0
    %101 = vmatpush1.msra.mxu0 0.0
    %102 = vmatprep.subr.mxu0 0.0
    %103 = vmatpush1.msra.mxu0 0.0
    %104 = vmatprep.subr.mxu0 0.0
    %105 = vmatpush1.msra.mxu0 0.0
    %106 = vmatprep.subr.mxu0 0.0
    %107 = vmatpush1.msra.mxu0 0.0
    %108 = vmatprep.subr.mxu0 0.0
    %109 = vmatpush1.msra.mxu0 0.0
    %110 = vmatprep.subr.mxu0 0.0
    %111 = vmatpush1.msra.mxu0 0.0
    %112 = vmatprep.subr.mxu0 0.0
    %113 = vmatpush1.msra.mxu0 0.0
    %114 = vmatprep.subr.mxu0 0.0
    %115 = vmatpush1.msra.mxu0 0.0
    %116 = vmatprep.subr.mxu0 0.0
    %117 = vmatpush1.msra.mxu0 0.0
    %118 = vmatprep.subr.mxu0 0.0
    %119 = vmatpush1.msra.mxu0 0.0
    %120 = vmatprep.subr.mxu0 0.0
    %121 = vmatpush1.msra.mxu0 0.0
    %122 = vmatprep.subr.mxu0 0.0
    %123 = vmatpush1.msra.mxu0 0.0
    %124 = vmatprep.subr.mxu0 0.0
    %125 = vmatpush1.msra.mxu0 0.0
    %126 = vmatprep.subr.mxu0 0.0
    %127 = vmatpush1.msra.mxu0 0.0
    %128 = vmatprep.subr.mxu0 0.0
    %129 = vmatpush1.msra.mxu0 0.0
    %130 = vmatprep.subr.mxu0 0.0
    %131 = vmatpush1.msra.mxu0 0.0
    %132 = vmatprep.subr.mxu0 0.0
    %133 = vmatpush1.msra.mxu0 0.0
    %134 = vmatprep.subr.mxu0 0.0
    %135 = vmatpush1.msra.mxu0 0.0
    %136 = vmatprep.subr.mxu0 0.0
    %137 = vmatpush1.msra.mxu0 0.0
    %138 = vmatprep.subr.mxu0 0.0
    %139 = vmatpush1.msra.mxu0 0.0
    %140 = vmatprep.subr.mxu0 0.0
    %141 = vmatpush1.msra.mxu0 0.0
    %142 = vmatprep.subr.mxu0 0.0
    %143 = vmatpush1.msra.mxu0 0.0
    %144 = vmatprep.subr.mxu0 0.0
    %145 = vmatpush1.msra.mxu0 0.0
    %146 = vmatprep.subr.mxu0 0.0
    %147 = vmatpush1.msra.mxu0 0.0
    %148 = vmatprep.subr.mxu0 0.0
    %149 = vmatpush1.msra.mxu0 0.0
    %150 = vmatprep.subr.mxu0 0.0
    %151 = vmatpush1.msra.mxu0 0.0
    %152 = vmatprep.subr.mxu0 0.0
    %153 = vmatpush1.msra.mxu0 0.0
    %154 = vmatprep.subr.mxu0 0.0
    %155 = vmatpush1.msra.mxu0 0.0
    %156 = vmatprep.subr.mxu0 0.0
    %157 = vmatpush1.msra.mxu0 0.0
    %158 = vmatprep.mubr.f32.mxu0 0.0
    %159 = vmatmul.mubr.f32.gmra.mrb[0].mxu0 %v92
    %v160 = vpop.f32.mrb[0].mxu0
    %v161 = vadd.f32 %v88, %v160
    %v162 = vpop.f32.mrb[0].mxu0
    %163 = vdwg.mxu0
    %v164 = vmax.f32 %v161, 0.0
    %v165 = vld [vmem:[#allocation7] sm:$0xff]
    %v166 = vld [vmem:[#allocation7 + $0x8] sm:$0xff]
    %v167 = vld [vmem:[#allocation7 + $0x10] sm:$0xff]
    %v168 = vld [vmem:[#allocation7 + $0x18] sm:$0xff]
    %v169 = vld [vmem:[%s4] sm:$0x1]
    %v171 = vlaneseq
    %v172 = vshrl.u32 %v171, 7
    %v173 = vsub.s32 0, %v172
    %v174 = vrot.slane %v169, %v173
    %vm176 = vcmask 261120
    %v178 = vsel %vm176, %v164, 0
    %180 = vmatprep.subr.mxu0 0.0
    %181 = vmatpush1.msra.mxu0 %v165
    %182 = vmatprep.subr.mxu0 0.0
    %183 = vmatpush1.msra.mxu0 %v166
    %184 = vmatprep.subr.mxu0 0.0
    %185 = vmatpush1.msra.mxu0 %v167
    %186 = vmatprep.subr.mxu0 0.0
    %187 = vmatpush1.msra.mxu0 %v168
    %188 = vmatprep.subr.mxu0 0.0
    %189 = vmatpush1.msra.mxu0 0.0
    %190 = vmatprep.subr.mxu0 0.0
    %191 = vmatpush1.msra.mxu0 0.0
    %192 = vmatprep.subr.mxu0 0.0
    %193 = vmatpush1.msra.mxu0 0.0
    %194 = vmatprep.subr.mxu0 0.0
    %195 = vmatpush1.msra.mxu0 0.0
    %196 = vmatprep.subr.mxu0 0.0
    %197 = vmatpush1.msra.mxu0 0.0
    %198 = vmatprep.subr.mxu0 0.0
    %199 = vmatpush1.msra.mxu0 0.0
    %200 = vmatprep.subr.mxu0 0.0
    %201 = vmatpush1.msra.mxu0 0.0
    %202 = vmatprep.subr.mxu0 0.0
    %203 = vmatpush1.msra.mxu0 0.0
    %204 = vmatprep.subr.mxu0 0.0
    %205 = vmatpush1.msra.mxu0 0.0
    %206 = vmatprep.subr.mxu0 0.0
    %207 = vmatpush1.msra.mxu0 0.0
    %208 = vmatprep.subr.mxu0 0.0
    %209 = vmatpush1.msra.mxu0 0.0
    %210 = vmatprep.subr.mxu0 0.0
    %211 = vmatpush1.msra.mxu0 0.0
    %212 = vmatprep.subr.mxu0 0.0
    %213 = vmatpush1.msra.mxu0 0.0
    %214 = vmatprep.subr.mxu0 0.0
    %215 = vmatpush1.msra.mxu0 0.0
    %216 = vmatprep.subr.mxu0 0.0
    %217 = vmatpush1.msra.mxu0 0.0
    %218 = vmatprep.subr.mxu0 0.0
    %219 = vmatpush1.msra.mxu0 0.0
    %220 = vmatprep.subr.mxu0 0.0
    %221 = vmatpush1.msra.mxu0 0.0
    %222 = vmatprep.subr.mxu0 0.0
    %223 = vmatpush1.msra.mxu0 0.0
    %224 = vmatprep.subr.mxu0 0.0
    %225 = vmatpush1.msra.mxu0 0.0
    %226 = vmatprep.subr.mxu0 0.0
    %227 = vmatpush1.msra.mxu0 0.0
    %228 = vmatprep.subr.mxu0 0.0
    %229 = vmatpush1.msra.mxu0 0.0
    %230 = vmatprep.subr.mxu0 0.0
    %231 = vmatpush1.msra.mxu0 0.0
    %232 = vmatprep.subr.mxu0 0.0
    %233 = vmatpush1.msra.mxu0 0.0
    %234 = vmatprep.subr.mxu0 0.0
    %235 = vmatpush1.msra.mxu0 0.0
    %236 = vmatprep.subr.mxu0 0.0
    %237 = vmatpush1.msra.mxu0 0.0
    %238 = vmatprep.subr.mxu0 0.0
    %239 = vmatpush1.msra.mxu0 0.0
    %240 = vmatprep.subr.mxu0 0.0
    %241 = vmatpush1.msra.mxu0 0.0
    %242 = vmatprep.subr.mxu0 0.0
    %243 = vmatpush1.msra.mxu0 0.0
    %244 = vmatprep.mubr.f32.mxu0 0.0
    %245 = vmatmul.mubr.f32.gmra.mrb[0].mxu0 %v178
    %v246 = vpop.f32.mrb[0].mxu0
    %v247 = vadd.f32 %v174, %v246
    %v248 = vpop.f32.mrb[0].mxu0
    %249 = vdwg.mxu0
    %v250 = vmax.f32 %v247, 0.0
    %v251 = vld [vmem:[#allocation8] sm:$0xff]
    %v252 = vld [vmem:[#allocation8 + $0x8] sm:$0xff]
    %v253 = vld [vmem:[#allocation8 + $0x10] sm:$0xff]
    %v254 = vld [vmem:[#allocation8 + $0x18] sm:$0xff]
    %v255 = vld [vmem:[%s6] sm:$0x1]
    %v257 = vlaneseq
    %v258 = vshrl.u32 %v257, 7
    %v259 = vsub.s32 0, %v258
    %v260 = vrot.slane %v255, %v259
    %v263 = vsel %vm176, %v250, 0
    %265 = vmatprep.subr.mxu0 0.0
    %266 = vmatpush1.msra.mxu0 %v251
    %267 = vmatprep.subr.mxu0 0.0
    %268 = vmatpush1.msra.mxu0 %v252
    %269 = vmatprep.subr.mxu0 0.0
    %270 = vmatpush1.msra.mxu0 %v253
    %271 = vmatprep.subr.mxu0 0.0
    %272 = vmatpush1.msra.mxu0 %v254
    %273 = vmatprep.subr.mxu0 0.0
    %274 = vmatpush1.msra.mxu0 0.0
    %275 = vmatprep.subr.mxu0 0.0
    %276 = vmatpush1.msra.mxu0 0.0
    %277 = vmatprep.subr.mxu0 0.0
    %278 = vmatpush1.msra.mxu0 0.0
    %279 = vmatprep.subr.mxu0 0.0
    %280 = vmatpush1.msra.mxu0 0.0
    %281 = vmatprep.subr.mxu0 0.0
    %282 = vmatpush1.msra.mxu0 0.0
    %283 = vmatprep.subr.mxu0 0.0
    %284 = vmatpush1.msra.mxu0 0.0
    %285 = vmatprep.subr.mxu0 0.0
    %286 = vmatpush1.msra.mxu0 0.0
    %287 = vmatprep.subr.mxu0 0.0
    %288 = vmatpush1.msra.mxu0 0.0
    %289 = vmatprep.subr.mxu0 0.0
    %290 = vmatpush1.msra.mxu0 0.0
    %291 = vmatprep.subr.mxu0 0.0
    %292 = vmatpush1.msra.mxu0 0.0
    %293 = vmatprep.subr.mxu0 0.0
    %294 = vmatpush1.msra.mxu0 0.0
    %295 = vmatprep.subr.mxu0 0.0
    %296 = vmatpush1.msra.mxu0 0.0
    %297 = vmatprep.subr.mxu0 0.0
    %298 = vmatpush1.msra.mxu0 0.0
    %299 = vmatprep.subr.mxu0 0.0
    %300 = vmatpush1.msra.mxu0 0.0
    %301 = vmatprep.subr.mxu0 0.0
    %302 = vmatpush1.msra.mxu0 0.0
    %303 = vmatprep.subr.mxu0 0.0
    %304 = vmatpush1.msra.mxu0 0.0
    %305 = vmatprep.subr.mxu0 0.0
    %306 = vmatpush1.msra.mxu0 0.0
    %307 = vmatprep.subr.mxu0 0.0
    %308 = vmatpush1.msra.mxu0 0.0
    %309 = vmatprep.subr.mxu0 0.0
    %310 = vmatpush1.msra.mxu0 0.0
    %311 = vmatprep.subr.mxu0 0.0
    %312 = vmatpush1.msra.mxu0 0.0
    %313 = vmatprep.subr.mxu0 0.0
    %314 = vmatpush1.msra.mxu0 0.0
    %315 = vmatprep.subr.mxu0 0.0
    %316 = vmatpush1.msra.mxu0 0.0
    %317 = vmatprep.subr.mxu0 0.0
    %318 = vmatpush1.msra.mxu0 0.0
    %319 = vmatprep.subr.mxu0 0.0
    %320 = vmatpush1.msra.mxu0 0.0
    %321 = vmatprep.subr.mxu0 0.0
    %322 = vmatpush1.msra.mxu0 0.0
    %323 = vmatprep.subr.mxu0 0.0
    %324 = vmatpush1.msra.mxu0 0.0
    %325 = vmatprep.subr.mxu0 0.0
    %326 = vmatpush1.msra.mxu0 0.0
    %327 = vmatprep.subr.mxu0 0.0
    %328 = vmatpush1.msra.mxu0 0.0
    %329 = vmatprep.mubr.f32.mxu0 0.0
    %330 = vmatmul.mubr.f32.gmra.mrb[0].mxu0 %v263
    %v331 = vpop.f32.mrb[0].mxu0
    %v332 = vadd.f32 %v260, %v331
    %v333 = vpop.f32.mrb[0].mxu0
    %334 = vdwg.mxu0
    %335 = vst [vmem:[#allocation10] sm:$0xf] %v332
    // Predicated region
    $region46: #{game_state_mlp_forward.1} parent=1 // pred_check
      _
    $region47: #{game_state_mlp_forward.1} parent=1 // pred_check_branch
      %337 = sbr.rel (0) target = $region49
    $region48: #{game_state_mlp_forward.1} parent=1 // pred_region
      %s339 = ssub.s32 64, 64
      %340 = vsyncadd [#allocation4], %s339
      %s342 = sshll.u32 [#allocation10], 4
      %s343 = int_to_ptr.vmem [resolvable:$true] %s342
      %345 = dma.vmem_to_hbm [thread:$0]  %s343, 64, %s7, [#allocation4]
    $region49: #{game_state_mlp_forward.1} parent=1 // pred_fallthru
      _
    // Predicated region
    $region50: #{game_state_mlp_forward.1} parent=1 // pred_check
      _
    $region51: #{game_state_mlp_forward.1} parent=1 // pred_check_branch
      %347 = sbr.rel (0) target = $region53
    $region52: #{game_state_mlp_forward.1} parent=1 // pred_region
      %348 = dma.done [#allocation4], 64
    $region53: #{game_state_mlp_forward.1} parent=1 // pred_fallthru
      _
    %349 = vsyncpa [#allocation3], 1
    %350 = vsyncpa [#allocation6], 1
    %351 = vsyncpa [#allocation9], 1
    %352 = vsyncpa [#allocation4], 1

</llo_original>
